<compile_context>
chip_gen: v5e
topology: v5e:2x2
jax: 0.10.0
libtpu: 0.0.40
codegen_flags: <defaults>
</compile_context>

<pallas_src>
import math

import jax
import jax.numpy as jnp
from jax.experimental import pallas as pl
from jax.experimental.pallas import tpu as pltpu


# ----------------------------------------------------------------------------
# Beta schedules (plain JAX glue, matches the PyTorch reference)
# ----------------------------------------------------------------------------
def cosine_beta_schedule(timesteps: int, s: float = 0.008) -> jnp.ndarray:
    steps = timesteps + 1
    x = jnp.linspace(0.0, float(timesteps), steps, dtype=jnp.float32)
    alphas_cumprod = jnp.cos((x / timesteps + s) / (1.0 + s) * math.pi * 0.5) ** 2
    alphas_cumprod = alphas_cumprod / alphas_cumprod[0]
    betas = 1.0 - alphas_cumprod[1:] / alphas_cumprod[:-1]
    return jnp.clip(betas, 0.0, 0.999)


def linear_beta_schedule(timesteps: int, start: float = 0.0001, end: float = 0.02) -> jnp.ndarray:
    scale = 1000.0 / timesteps
    return jnp.linspace(scale * start, scale * end, timesteps, dtype=jnp.float32)


def make_diffusion_buffers(timesteps: int, beta_schedule: str = "cosine"):
    if beta_schedule == "linear":
        betas = linear_beta_schedule(timesteps)
    elif beta_schedule == "cosine":
        betas = cosine_beta_schedule(timesteps)
    else:
        raise ValueError(f"unknown beta schedule {beta_schedule}")
    alphas = 1.0 - betas
    alphas_cumprod = jnp.cumprod(alphas, axis=0)
    sqrt_alphas_cumprod = jnp.sqrt(alphas_cumprod)
    sqrt_one_minus_alphas_cumprod = jnp.sqrt(1.0 - alphas_cumprod)
    return sqrt_alphas_cumprod, sqrt_one_minus_alphas_cumprod


# ----------------------------------------------------------------------------
# Pallas kernel: x_t = scale*x0 + sigma*noise + bias   (per-row scale/bias)
#   scale = 2*sqrt_ac[t], bias = -sqrt_ac[t]  when normalize is folded in
#   sigma = sqrt_one_minus_ac[t]
# ----------------------------------------------------------------------------
def _q_sample_kernel(scale_ref, bias_ref, sigma_ref,   # (TILE_N, 1) f32 rows
                     x0_ref, noise_ref,                # (TILE_N, TILE_E)
                     xt_ref):                          # (TILE_N, TILE_E) out
    x0 = x0_ref[...].astype(jnp.float32)
    nz = noise_ref[...].astype(jnp.float32)
    xt = scale_ref[...] * x0 + sigma_ref[...] * nz + bias_ref[...]
    xt_ref[...] = xt.astype(xt_ref.dtype)


def forward_diffusion(x_0, t, noise, sqrt_ac, sqrt_omac, *, normalize=True,
                      out_dtype=None, tile_n=None, tile_e=None):
    """q-sample: returns x_t, shape (N, C, H, W). `noise` is (N, C, H, W)."""
    N, C, H, W = x_0.shape
    E = C * H * W
    if out_dtype is None:
        out_dtype = x_0.dtype

    timesteps = sqrt_ac.shape[0]
    # Clamp t: dynamic gathers have no runtime bounds check downstream.
    t = jnp.clip(t.astype(jnp.int32), 0, timesteps - 1)
    sa = sqrt_ac[t].astype(jnp.float32)      # (N,)
    so = sqrt_omac[t].astype(jnp.float32)    # (N,)

    if normalize:
        # Fold normalize_to_neg_one_to_one into scale/bias:
        #   sa*(2*x0 - 1) + so*noise == (2*sa)*x0 + so*noise + (-sa)
        scale = 2.0 * sa
        bias = -sa
    else:
        scale = sa
        bias = jnp.zeros_like(sa)
    scale = scale[:, None]                    # (N, 1)
    bias = bias[:, None]
    sigma = so[:, None]

    x_flat = x_0.reshape(N, E)                # lane-dense 2D layout
    noise_flat = noise.reshape(N, E)

    # ---- tiling: big lane-dense blocks, bounded for VMEM on all gens -------
    if tile_n is None:
        tile_n = N if N <= 8 else 8
    if tile_e is None:
        if E <= (1 << 20):
            tile_e = E                        # full row: always layout-legal
        else:
            # ~2 MiB f32 per streamed array per tile; x0 + noise + x_t, each
            # double-buffered, stays well inside scoped-VMEM on v5e/v6e/v7x.
            target_elems = (2 * 1024 * 1024) // (tile_n * 4)
            tile_e = max(128, (target_elems // 128) * 128)

    grid = (pl.cdiv(N, tile_n), pl.cdiv(E, tile_e))

    img_spec = pl.BlockSpec((tile_n, tile_e), lambda i, j: (i, j))
    row_spec = pl.BlockSpec((tile_n, 1), lambda i, j: (i, 0))

    x_t_flat = pl.pallas_call(
        _q_sample_kernel,
        out_shape=jax.ShapeDtypeStruct((N, E), out_dtype),
        grid_spec=pltpu.PrefetchScalarGridSpec(
            num_scalar_prefetch=0,
            grid=grid,
            in_specs=[row_spec, row_spec, row_spec, img_spec, img_spec],
            out_specs=img_spec,
        ),
        compiler_params=pltpu.CompilerParams(
            dimension_semantics=("parallel", "parallel")),
    )(scale, bias, sigma, x_flat, noise_flat)

    return x_t_flat.reshape(N, C, H, W)


# ----------------------------------------------------------------------------
# DiffusionModel.forward equivalent
# ----------------------------------------------------------------------------
def diffusion_model_forward(x_0, t, key, sqrt_ac, sqrt_omac, *, normalize=True):
    """Mirrors DiffusionModel.forward: noise x_0 to timestep t; returns
    (model_out, noise)."""
    noise = jax.random.normal(key, x_0.shape, dtype=jnp.float32)
    x_t = forward_diffusion(x_0, t, noise, sqrt_ac, sqrt_omac,
                            normalize=normalize)
    # TODO(synk): Unet(dim, dim_mults, channels) backbone is not defined in the
    # reference module; passing x_t through in place of self.model(x_t, t, cond).
    model_out = x_t
    return model_out, noise


# ----------------------------------------------------------------------------
# Demo / self-check
# ----------------------------------------------------------------------------
if __name__ == "__main__":
    TIMESTEPS = 1000
    N, C, H, W = 2, 4, 16, 16   # flattened element axis E = 1024 (multiple of 128)

    key = jax.random.PRNGKey(0)
    k_x, k_t, k_n = jax.random.split(key, 3)

    x_0 = jax.random.uniform(k_x, (N, C, H, W), dtype=jnp.float32)   # image in [0,1]
    t = jax.random.randint(k_t, (N,), 0, TIMESTEPS, dtype=jnp.int32)

    sqrt_ac, sqrt_omac = make_diffusion_buffers(TIMESTEPS, "cosine")

    model_out, noise = diffusion_model_forward(x_0, t, k_n, sqrt_ac, sqrt_omac,
                                               normalize=True)
    model_out = jax.block_until_ready(model_out)
    noise = jax.block_until_ready(noise)

    # Reference: the PyTorch q-sample formula with the same noise.
    x0n = x_0 * 2.0 - 1.0
    sa = sqrt_ac[t][:, None, None, None]
    so = sqrt_omac[t][:, None, None, None]
    ref = sa * x0n + so * noise
    assert jnp.allclose(model_out, ref, atol=1e-5, rtol=1e-5), "mismatch vs reference"
    assert model_out.shape == (N, C, H, W) and noise.shape == (N, C, H, W)

    print("KERNEL_OK")
</pallas_src>

<mosaic_0001>
module attributes {stable_mosaic.version = 11 : i64} {
  func.func @_q_sample_kernel(%arg0: i32, %arg1: i32, %arg2: memref<2x1xf32, #tpu.memory_space<vmem>>, %arg3: memref<2x1xf32, #tpu.memory_space<vmem>>, %arg4: memref<2x1xf32, #tpu.memory_space<vmem>>, %arg5: memref<2x1024xf32, #tpu.memory_space<vmem>>, %arg6: memref<2x1024xf32, #tpu.memory_space<vmem>>, %arg7: memref<2x1024xf32, #tpu.memory_space<vmem>>) attributes {dimension_semantics = [#tpu.dimension_semantics<parallel>, #tpu.dimension_semantics<parallel>], iteration_bounds = array<i64: 1, 1>, scalar_prefetch = 0 : i64, scratch_operands = 0 : i64, tpu.core_type = #tpu.core_type<tc>, window_params = [{transform_indices = @transform_0, window_bounds = array<i64: 2, 1>}, {transform_indices = @transform_1, window_bounds = array<i64: 2, 1>}, {transform_indices = @transform_2, window_bounds = array<i64: 2, 1>}, {transform_indices = @transform_3, window_bounds = array<i64: 2, 1024>}, {transform_indices = @transform_4, window_bounds = array<i64: 2, 1024>}, {transform_indices = @transform_5, window_bounds = array<i64: 2, 1024>}]} {
    %c0 = arith.constant 0 : index
    %c0_0 = arith.constant 0 : index
    %0 = vector.load %arg5[%c0, %c0_0] : memref<2x1024xf32, #tpu.memory_space<vmem>>, vector<2x1024xf32>
    %c0_1 = arith.constant 0 : index
    %c0_2 = arith.constant 0 : index
    %1 = vector.load %arg6[%c0_1, %c0_2] : memref<2x1024xf32, #tpu.memory_space<vmem>>, vector<2x1024xf32>
    %c0_3 = arith.constant 0 : index
    %c0_4 = arith.constant 0 : index
    %2 = vector.load %arg2[%c0_3, %c0_4] : memref<2x1xf32, #tpu.memory_space<vmem>>, vector<2x1xf32>
    %3 = vector.broadcast %2 : vector<2x1xf32> to vector<2x1024xf32>
    %4 = arith.mulf %3, %0 : vector<2x1024xf32>
    %c0_5 = arith.constant 0 : index
    %c0_6 = arith.constant 0 : index
    %5 = vector.load %arg4[%c0_5, %c0_6] : memref<2x1xf32, #tpu.memory_space<vmem>>, vector<2x1xf32>
    %6 = vector.broadcast %5 : vector<2x1xf32> to vector<2x1024xf32>
    %7 = arith.mulf %6, %1 : vector<2x1024xf32>
    %8 = arith.addf %4, %7 : vector<2x1024xf32>
    %c0_7 = arith.constant 0 : index
    %c0_8 = arith.constant 0 : index
    %9 = vector.load %arg3[%c0_7, %c0_8] : memref<2x1xf32, #tpu.memory_space<vmem>>, vector<2x1xf32>
    %10 = vector.broadcast %9 : vector<2x1xf32> to vector<2x1024xf32>
    %11 = arith.addf %8, %10 : vector<2x1024xf32>
    %c0_9 = arith.constant 0 : index
    %c0_10 = arith.constant 0 : index
    %12 = vector.load %arg7[%c0_9, %c0_10] : memref<2x1024xf32, #tpu.memory_space<vmem>>, vector<2x1024xf32>
    tpu.vector_store %arg7[%c0_9, %c0_10], %11 {strides = array<i32>} : memref<2x1024xf32, #tpu.memory_space<vmem>>, vector<2x1024xf32>,
    return
  }
  func.func @transform_0(%arg0: i32, %arg1: i32) -> (i32, i32) {
    %c0_i32 = arith.constant 0 : i32
    %c0_i32_0 = arith.constant 0 : i32
    return %arg0, %c0_i32 : i32, i32
  }
  func.func @transform_1(%arg0: i32, %arg1: i32) -> (i32, i32) {
    %c0_i32 = arith.constant 0 : i32
    %c0_i32_0 = arith.constant 0 : i32
    return %arg0, %c0_i32 : i32, i32
  }
  func.func @transform_2(%arg0: i32, %arg1: i32) -> (i32, i32) {
    %c0_i32 = arith.constant 0 : i32
    %c0_i32_0 = arith.constant 0 : i32
    return %arg0, %c0_i32 : i32, i32
  }
  func.func @transform_3(%arg0: i32, %arg1: i32) -> (i32, i32) {
    %c0_i32 = arith.constant 0 : i32
    return %arg0, %arg1 : i32, i32
  }
  func.func @transform_4(%arg0: i32, %arg1: i32) -> (i32, i32) {
    %c0_i32 = arith.constant 0 : i32
    return %arg0, %arg1 : i32, i32
  }
  func.func @transform_5(%arg0: i32, %arg1: i32) -> (i32, i32) {
    %c0_i32 = arith.constant 0 : i32
    return %arg0, %arg1 : i32, i32
  }
}

</mosaic_0001>

<llo_original>
// kernel: tpu_custom_call.1
$region0: #{tpu_custom_call.1}
  #allocation0 [shape = 'u32[]', space=smem, size = 0x4, offset = 0x4, fixed_abs, tag = 'smem constant byte address 0x4 - core index']
  #allocation1 [shape = 'u32[72,128]{1,0:T(1,128)}', space=vmem, size = 0x9000, scoped, tag = 'internal scratch']
  %s0 = inlined_call_operand.vmem [shape: f32[2,1], index: 0, kind: input, shape index: {}]
  %s1 = inlined_call_operand.vmem [shape: f32[2,1], index: 1, kind: input, shape index: {}]
  %s2 = inlined_call_operand.vmem [shape: f32[2,1], index: 2, kind: input, shape index: {}]
  %s3 = inlined_call_operand.hbm [shape: f32[2,1024], index: 3, kind: input, shape index: {}]
  %s4 = inlined_call_operand.hbm [shape: f32[2,1024], index: 4, kind: input, shape index: {}]
  %s5 = inlined_call_operand.hbm [shape: f32[2,1024], index: 5, kind: output, shape index: {}]
  %s6 = sld [smem:[#allocation0]]
  $region38: #{tpu_custom_call.1} parent=0
    _
  %s8 = ssub.s32 1, %s6
  %s9 = scalar_select 0, %s8, %s6
  $region1: #{tpu_custom_call.1} parent=0
    #allocation2 [shape = 'u8[8192]{0}', space=vmem, size = 0x2000, scoped, tag = 'input window, operand 3, single buffered']
    #allocation3 [shape = 's32[1]{0}', space=sflag, size = 0x4, scoped, tag = 'scoped memory for tpu_custom_call.1']
    #allocation4 [shape = 's32[1]{0}', space=sflag, size = 0x4, scoped, tag = 'scoped memory for tpu_custom_call.1']
    #allocation5 [shape = 'u8[8192]{0}', space=vmem, size = 0x2000, scoped, tag = 'input window, operand 4, single buffered']
    #allocation6 [shape = 's32[1]{0}', space=sflag, size = 0x4, scoped, tag = 'scoped memory for tpu_custom_call.1']
    #allocation7 [shape = 'u8[8192]{0}', space=vmem, size = 0x2000, scoped, tag = 'output window, operand 0, single buffered']
    %10 = vsyncpa [#allocation3], 0
    %11 = vsyncpa [#allocation6], 0
    %12 = vsyncpa [#allocation4], 0
    // Predicated region
    $region2: #{tpu_custom_call.1} parent=1 // pred_check
      _
    $region3: #{tpu_custom_call.1} parent=1 // pred_check_branch
      %14 = sbr.rel (0) target = $region5
    $region4: #{tpu_custom_call.1} parent=1 // pred_region
      _
    $region5: #{tpu_custom_call.1} parent=1 // pred_fallthru
      _
    // Predicated region
    $region6: #{tpu_custom_call.1} parent=1 // pred_check
      _
    $region7: #{tpu_custom_call.1} parent=1 // pred_check_branch
      %16 = sbr.rel (0) target = $region9
    $region8: #{tpu_custom_call.1} parent=1 // pred_region
      _
    $region9: #{tpu_custom_call.1} parent=1 // pred_fallthru
      _
    // Predicated region
    $region10: #{tpu_custom_call.1} parent=1 // pred_check
      _
    $region11: #{tpu_custom_call.1} parent=1 // pred_check_branch
      %18 = sbr.rel (0) target = $region13
    $region12: #{tpu_custom_call.1} parent=1 // pred_region
      _
    $region13: #{tpu_custom_call.1} parent=1 // pred_fallthru
      _
    // Predicated region
    $region14: #{tpu_custom_call.1} parent=1 // pred_check
      _
    $region15: #{tpu_custom_call.1} parent=1 // pred_check_branch
      %20 = sbr.rel (0) target = $region17
    $region16: #{tpu_custom_call.1} parent=1 // pred_region
      %22 = vsyncadd [#allocation3], 0
      %s24 = sshll.u32 %s3, 4
      %s25 = int_to_ptr.hbm [resolvable:$true] %s24
      %s26 = sshll.u32 [#allocation2], 4
      %s27 = int_to_ptr.vmem [resolvable:$true] %s26
      %29 = dma.hbm_to_vmem [thread:$0]  %s25, 256, %s27, [#allocation3]
    $region17: #{tpu_custom_call.1} parent=1 // pred_fallthru
      _
    // Predicated region
    $region18: #{tpu_custom_call.1} parent=1 // pred_check
      _
    $region19: #{tpu_custom_call.1} parent=1 // pred_check_branch
      %31 = sbr.rel (0) target = $region21
    $region20: #{tpu_custom_call.1} parent=1 // pred_region
      %33 = vsyncadd [#allocation6], 0
      %s35 = sshll.u32 %s4, 4
      %s36 = int_to_ptr.hbm [resolvable:$true] %s35
      %s37 = sshll.u32 [#allocation5], 4
      %s38 = int_to_ptr.vmem [resolvable:$true] %s37
      %40 = dma.hbm_to_vmem [thread:$0]  %s36, 256, %s38, [#allocation6]
    $region21: #{tpu_custom_call.1} parent=1 // pred_fallthru
      _
    // Predicated region
    $region22: #{tpu_custom_call.1} parent=1 // pred_check
      _
    $region23: #{tpu_custom_call.1} parent=1 // pred_check_branch
      %42 = sbr.rel (0) target = $region25
    $region24: #{tpu_custom_call.1} parent=1 // pred_region
      %44 = dma.done [#allocation3], 256
    $region25: #{tpu_custom_call.1} parent=1 // pred_fallthru
      _
    // Predicated region
    $region26: #{tpu_custom_call.1} parent=1 // pred_check
      _
    $region27: #{tpu_custom_call.1} parent=1 // pred_check_branch
      %46 = sbr.rel (0) target = $region29
    $region28: #{tpu_custom_call.1} parent=1 // pred_region
      %48 = dma.done [#allocation6], 256
    $region29: #{tpu_custom_call.1} parent=1 // pred_fallthru
      _
    %v49 = vld [vmem:[#allocation2] sm:$0xff]
    %v50 = vld [vmem:[#allocation2 + $0x8] sm:$0xff]
    %v51 = vld [vmem:[#allocation5] sm:$0xff]
    %v52 = vld [vmem:[#allocation5 + $0x8] sm:$0xff]
    %v53 = vld [vmem:[%s0] sm:$0x3]
    %55 = vset.pattern.permute.xlu0 0
    %56 = vperm.xlu0 %55, %v53
    %v57 = vpop.permute.xlu0 %56
    %61 = vst [vmem:[#allocation1] ss:$4 sm:$0xff] %v49
    %s62 = scalar_lea.vmem [#allocation1], 32
    %63 = vst [vmem:[%s62] ss:$4 sm:$0xff] %v50
    %v64 = vld.sshfl [vmem:[#allocation1] sm:$0xff pattern:$0x73625140]
    %v65 = vld.sshfl [vmem:[#allocation1 + $0x8] sm:$0xff pattern:$0x73625140]
    %v66 = vld.sshfl [vmem:[#allocation1 + $0x10] sm:$0xff pattern:$0x73625140]
    %v67 = vld.sshfl [vmem:[#allocation1 + $0x18] sm:$0xff pattern:$0x73625140]
    %v68 = vld.sshfl [vmem:[#allocation1 + $0x20] sm:$0xff pattern:$0x73625140]
    %v69 = vld.sshfl [vmem:[#allocation1 + $0x28] sm:$0xff pattern:$0x73625140]
    %v70 = vld.sshfl [vmem:[#allocation1 + $0x30] sm:$0xff pattern:$0x73625140]
    %v71 = vld.sshfl [vmem:[#allocation1 + $0x38] sm:$0xff pattern:$0x73625140]
    %v80 = vmul.f32 %v57, %v64
    %v81 = vmul.f32 %v57, %v65
    %v82 = vmul.f32 %v57, %v66
    %v83 = vmul.f32 %v57, %v67
    %v84 = vmul.f32 %v57, %v68
    %v85 = vmul.f32 %v57, %v69
    %v86 = vmul.f32 %v57, %v70
    %v87 = vmul.f32 %v57, %v71
    %v88 = vld [vmem:[%s2] sm:$0x3]
    %90 = vset.pattern.permute.xlu0 0
    %91 = vperm.xlu0 %90, %v88
    %v92 = vpop.permute.xlu0 %91
    %96 = vst [vmem:[#allocation1] ss:$4 sm:$0xff] %v51
    %s97 = scalar_lea.vmem [#allocation1], 32
    %98 = vst [vmem:[%s97] ss:$4 sm:$0xff] %v52
    %v99 = vld.sshfl [vmem:[#allocation1] sm:$0xff pattern:$0x73625140]
    %v100 = vld.sshfl [vmem:[#allocation1 + $0x8] sm:$0xff pattern:$0x73625140]
    %v101 = vld.sshfl [vmem:[#allocation1 + $0x10] sm:$0xff pattern:$0x73625140]
    %v102 = vld.sshfl [vmem:[#allocation1 + $0x18] sm:$0xff pattern:$0x73625140]
    %v103 = vld.sshfl [vmem:[#allocation1 + $0x20] sm:$0xff pattern:$0x73625140]
    %v104 = vld.sshfl [vmem:[#allocation1 + $0x28] sm:$0xff pattern:$0x73625140]
    %v105 = vld.sshfl [vmem:[#allocation1 + $0x30] sm:$0xff pattern:$0x73625140]
    %v106 = vld.sshfl [vmem:[#allocation1 + $0x38] sm:$0xff pattern:$0x73625140]
    %v115 = vmul.f32 %v92, %v99
    %v116 = vmul.f32 %v92, %v100
    %v117 = vmul.f32 %v92, %v101
    %v118 = vmul.f32 %v92, %v102
    %v119 = vmul.f32 %v92, %v103
    %v120 = vmul.f32 %v92, %v104
    %v121 = vmul.f32 %v92, %v105
    %v122 = vmul.f32 %v92, %v106
    %v123 = vadd.f32 %v80, %v115
    %v124 = vadd.f32 %v81, %v116
    %v125 = vadd.f32 %v82, %v117
    %v126 = vadd.f32 %v83, %v118
    %v127 = vadd.f32 %v84, %v119
    %v128 = vadd.f32 %v85, %v120
    %v129 = vadd.f32 %v86, %v121
    %v130 = vadd.f32 %v87, %v122
    %v131 = vld [vmem:[%s1] sm:$0x3]
    %133 = vset.pattern.permute.xlu0 0
    %134 = vperm.xlu0 %133, %v131
    %v135 = vpop.permute.xlu0 %134
    %v137 = vadd.f32 %v123, %v135
    %v138 = vadd.f32 %v124, %v135
    %v139 = vadd.f32 %v125, %v135
    %v140 = vadd.f32 %v126, %v135
    %v141 = vadd.f32 %v127, %v135
    %v142 = vadd.f32 %v128, %v135
    %v143 = vadd.f32 %v129, %v135
    %v144 = vadd.f32 %v130, %v135
    %v153 = vrot.slane %v138, 6
    %v154 = vrot.slane %v139, 4
    %v155 = vrot.slane %v140, 2
    %v156 = vrot.slane %v142, 6
    %v157 = vrot.slane %v143, 4
    %v158 = vrot.slane %v144, 2
    %vm159 = vcmask 1041408
    %v160 = vsel %vm159, %v137, %v153
    %vm161 = vcmask 1045508
    %v162 = vsel %vm161, %v154, %v155
    %vm163 = vcmask 1043456
    %v164 = vsel %vm163, %v160, %v162
    %v165 = vsel %vm159, %v141, %v156
    %v166 = vsel %vm161, %v157, %v158
    %v167 = vsel %vm163, %v165, %v166
    %170 = vst [vmem:[#allocation7] sm:$0xff] %v164
    %171 = vst [vmem:[#allocation7 + $0x8] sm:$0xff] %v167
    // Predicated region
    $region30: #{tpu_custom_call.1} parent=1 // pred_check
      _
    $region31: #{tpu_custom_call.1} parent=1 // pred_check_branch
      %173 = sbr.rel (0) target = $region33
    $region32: #{tpu_custom_call.1} parent=1 // pred_region
      %175 = vsyncadd [#allocation4], 0
      %s177 = sshll.u32 [#allocation7], 4
      %s178 = int_to_ptr.vmem [resolvable:$true] %s177
      %s179 = sshll.u32 %s5, 4
      %s180 = int_to_ptr.hbm [resolvable:$true] %s179
      %182 = dma.vmem_to_hbm [thread:$0]  %s178, 256, %s180, [#allocation4]
    $region33: #{tpu_custom_call.1} parent=1 // pred_fallthru
      _
    // Predicated region
    $region34: #{tpu_custom_call.1} parent=1 // pred_check
      _
    $region35: #{tpu_custom_call.1} parent=1 // pred_check_branch
      %184 = sbr.rel (0) target = $region37
    $region36: #{tpu_custom_call.1} parent=1 // pred_region
      %186 = dma.done [#allocation4], 256
    $region37: #{tpu_custom_call.1} parent=1 // pred_fallthru
      _
    %187 = vsyncpa [#allocation3], 1
    %188 = vsyncpa [#allocation6], 1
    %189 = vsyncpa [#allocation4], 1

</llo_original>
